<compile_context>
chip_gen: v5e
topology: v5e:2x2
jax: 0.10.0
libtpu: 0.0.40
codegen_flags: <defaults>
</compile_context>

<pallas_src>
import math
import numpy as np
import jax
import jax.numpy as jnp
from jax import lax
from jax.experimental import pallas as pl
from jax.experimental.pallas import tpu as pltpu


def _gaussian_1d(k, s):
    """1-D Gaussian taps matching the torch module's per-axis terms.  The
    module's 2-D normalization (w / w[0,0].sum()) factors over the two axes,
    so normalizing each 1-D vector reproduces it exactly."""
    g = []
    for i in range(k):
        if s > 0.0:
            d = ((i - k // 2) / s) ** 2
        else:
            d = 0.0 if abs(i - k // 2) < 0.001 else float("inf")
        g.append(math.exp(d / -2.0))
    tot = sum(g)
    return [v / tot for v in g]


def _choose_row_block(H, ph, hb, row_bytes, target_bytes):
    """Strip height TH: multiple of `hb`, <=256 rows, fits the byte target and
    leaves a last-strip remainder of 0 or >= ph (so the second-to-last strip's
    bottom-halo rows are always in bounds)."""
    if H * row_bytes <= target_bytes:
        return H
    cap = max(hb, min((256 // hb) * hb,
                      (target_bytes // max(row_bytes, 1)) // hb * hb))
    if H <= cap:
        return H
    th = cap
    while th >= hb:
        r = H % th
        if r == 0 or r >= ph:
            return th
        th -= hb
    return H  # pathological; fall back to a single strip


def _choose_batch_block(B, S, strip_bytes, target_bytes):
    """Images (N*C entries) per block: divides B, fits the byte target, and
    keeps >=2 grid steps when possible (v7x megacore)."""
    tb = max(1, min(B, target_bytes // max(strip_bytes, 1)))
    while B % tb:
        tb -= 1
    while tb > 1 and (B // tb) * S < 2:
        tb -= 1
        while B % tb:
            tb -= 1
    return tb


def gaussian_blur2d(x, kernel_size=5, stdev=1.0, *, row_block=None,
                    batch_block=None):
    """Forward pass of GaussianBlur2d. x: (N, C, H, W) -> (N, C, H, W)."""
    if not isinstance(kernel_size, tuple):
        kernel_size = (kernel_size, kernel_size)
    if not isinstance(stdev, tuple):
        stdev = (stdev, stdev)
    kh, kw = kernel_size
    assert kh % 2 == 1 and kw % 2 == 1 and min(kh, kw) > 1
    assert min(stdev) >= 0.0 and max(stdev) > 0.0

    N, C, H, W = x.shape
    ph, pw = kh // 2, kw // 2
    wy = _gaussian_1d(kh, stdev[0])    # Python floats -> multiply-by-immediate
    wx = _gaussian_1d(kw, stdev[1])

    B = N * C
    xb = x.reshape(B, H, W)            # merge leading dims: no data movement
    dsize = x.dtype.itemsize
    HB = max(8, -(-ph // 8) * 8)       # halo fetch block height (mult. of 8, >= ph)
    target = 2 * 1024 * 1024           # ~2 MiB per pipelined input block

    TH = row_block if row_block is not None else _choose_row_block(
        H, ph, HB, W * dsize, target)
    if TH >= H:
        TH = H
    S = -(-H // TH)
    if S > 1:
        assert TH % HB == 0, "row_block must be a multiple of the halo block"
        assert H % TH == 0 or H % TH >= ph, "bad row_block remainder"
    TB = batch_block if batch_block is not None else _choose_batch_block(
        B, S, TH * W * dsize, target)
    assert B % TB == 0

    TOP = HB                           # sublane-aligned interior offset in scratch
    THp = TOP + TH + ph                # scratch rows: [dead | top halo | interior | bottom halo]
    Wp = W + 2 * pw
    mid_y, mid_x = kh // 2, kw // 2
    rem = H % TH
    nHB = -(-H // HB)
    multi = S > 1
    f32 = jnp.float32

    def kernel(*refs):
        if multi:
            x_ref, top_ref, bot_ref, o_ref, xpad = refs
        else:
            x_ref, o_ref, xpad = refs
        s = pl.program_id(1)

        # Zero only the horizontal halo columns (everything else is fully
        # overwritten below) -- no full-scratch zero fill.
        xpad[:, :, 0:pw] = jnp.zeros((TB, THp, pw), f32)
        xpad[:, :, pw + W:] = jnp.zeros((TB, THp, pw), f32)

        # Current strip -> scratch interior (sublane-aligned at offset TOP).
        xpad[:, TOP:TOP + TH, pw:pw + W] = x_ref[...].astype(f32)

        # Ragged last strip: block rows past H are uninitialized -> zero them.
        if multi and rem != 0:
            @pl.when(s == S - 1)
            def _():
                xpad[:, TOP + rem:TOP + TH, pw:pw + W] = jnp.zeros(
                    (TB, TH - rem, W), f32)

        # Vertical halo rows: ph rows of the neighbouring strips, or zeros at
        # the image top/bottom ('same' zero padding).
        if multi:
            top = jnp.where(s == 0, 0.0, top_ref[:, HB - ph:, :].astype(f32))
            bot = jnp.where(s == S - 1, 0.0, bot_ref[:, 0:ph, :].astype(f32))
        else:
            top = jnp.zeros((TB, ph, W), f32)
            bot = jnp.zeros((TB, ph, W), f32)
        xpad[:, TOP - ph:TOP, pw:pw + W] = top
        xpad[:, TOP + TH:TOP + TH + ph, pw:pw + W] = bot

        # Vertical pass (symmetric taps: pair wy[k] == wy[kh-1-k]).
        base = TOP - ph
        tmp = wy[mid_y] * xpad[:, base + mid_y:base + mid_y + TH, :]
        for k in range(mid_y):
            tmp = tmp + wy[k] * (
                xpad[:, base + k:base + k + TH, :]
                + xpad[:, base + kh - 1 - k:base + kh - 1 - k + TH, :])

        # Horizontal pass: lane-dim shifts on the zero-padded columns.
        acc = wx[mid_x] * tmp[:, :, mid_x:mid_x + W]
        for k in range(mid_x):
            acc = acc + wx[k] * (tmp[:, :, k:k + W]
                                 + tmp[:, :, kw - 1 - k:kw - 1 - k + W])

        o_ref[...] = acc.astype(o_ref.dtype)

    in_specs = [pl.BlockSpec((TB, TH, W), lambda b, s: (b, s, 0))]
    inputs = [xb]
    if multi:
        stride = TH // HB
        in_specs.append(pl.BlockSpec(          # 8-row block just above the strip
            (TB, HB, W), lambda b, s: (b, jnp.maximum(s * stride - 1, 0), 0)))
        in_specs.append(pl.BlockSpec(          # 8-row block just below the strip
            (TB, HB, W),
            lambda b, s: (b, jnp.minimum((s + 1) * stride, nHB - 1), 0)))
        inputs += [xb, xb]

    out = pl.pallas_call(
        kernel,
        out_shape=jax.ShapeDtypeStruct((B, H, W), x.dtype),
        grid_spec=pltpu.PrefetchScalarGridSpec(
            num_scalar_prefetch=0,
            grid=(B // TB, S),
            in_specs=in_specs,
            out_specs=pl.BlockSpec((TB, TH, W), lambda b, s: (b, s, 0)),
            scratch_shapes=[pltpu.VMEM((TB, THp, Wp), f32)],
        ),
        compiler_params=pltpu.CompilerParams(
            dimension_semantics=("parallel", "parallel")),
    )(*inputs)

    return out.reshape(N, C, H, W)


# ----------------------------------------------------------------------------
# Reference (pure JAX) for checking.
# ----------------------------------------------------------------------------
def _make_w2d(c, kernel_size=5, stdev=1.0):
    """Independent reconstruction of the torch module's 2-D filter."""
    if not isinstance(kernel_size, tuple):
        kernel_size = (kernel_size, kernel_size)
    if not isinstance(stdev, tuple):
        stdev = (stdev, stdev)
    kh, kw = kernel_size
    w = np.zeros((kh, kw), np.float64)
    for y in range(kh):
        for x_ in range(kw):
            d = 0.0
            if stdev[0] > 0.0:
                d += ((y - kh // 2) / stdev[0]) ** 2
            else:
                d += 0.0 if abs(y - kh // 2) < 0.001 else float("inf")
            if stdev[1] > 0.0:
                d += ((x_ - kw // 2) / stdev[1]) ** 2
            else:
                d += 0.0 if abs(x_ - kw // 2) < 0.001 else float("inf")
            w[y, x_] = math.exp(d / -2.0)
    w = w / w.sum()   # == dividing by w[0,0].sum() in the torch module
    return jnp.asarray(np.broadcast_to(w, (c, kh, kw)).astype(np.float32))


def _reference(x, kernel_size=5, stdev=1.0):
    """Depthwise conv2d, groups=C, 'same' zero padding."""
    N, C, H, W = x.shape
    w = _make_w2d(C, kernel_size, stdev)            # (C, KH, KW)
    KH, KW = w.shape[1:]
    return lax.conv_general_dilated(
        x, w[:, None, :, :],
        window_strides=(1, 1),
        padding=((KH // 2, KH // 2), (KW // 2, KW // 2)),
        dimension_numbers=("NCHW", "OIHW", "NCHW"),
        feature_group_count=C,
        precision=lax.Precision.HIGHEST,
    )


if __name__ == "__main__":
    # Case 1: small shape matching the module's typical use (single-strip path).
    N, C, H, W = 2, 4, 16, 16
    x = jax.random.normal(jax.random.PRNGKey(0), (N, C, H, W), dtype=jnp.float32)
    out = jax.block_until_ready(gaussian_blur2d(x, kernel_size=5, stdev=1.0))
    ref = jax.block_until_ready(_reference(x, kernel_size=5, stdev=1.0))
    assert out.shape == (N, C, H, W)
    assert np.allclose(np.asarray(out), np.asarray(ref), atol=2e-5, rtol=1e-5)

    # Case 2: exercises the row-tiled path (halo fetch blocks + ragged last strip).
    x2 = jax.random.normal(jax.random.PRNGKey(1), (1, 3, 40, 24), dtype=jnp.float32)
    out2 = jax.block_until_ready(
        gaussian_blur2d(x2, kernel_size=5, stdev=1.0, row_block=16))
    ref2 = jax.block_until_ready(_reference(x2, kernel_size=5, stdev=1.0))
    assert out2.shape == x2.shape
    assert np.allclose(np.asarray(out2), np.asarray(ref2), atol=2e-5, rtol=1e-5)

    print("KERNEL_OK")
</pallas_src>

<mosaic_0001>
module attributes {stable_mosaic.version = 11 : i64} {
  func.func @kernel(%arg0: i32, %arg1: i32, %arg2: memref<4x16x16xf32, #tpu.memory_space<vmem>>, %arg3: memref<4x16x16xf32, #tpu.memory_space<vmem>>, %arg4: memref<4x26x20xf32, #tpu.memory_space<vmem>>) attributes {dimension_semantics = [#tpu.dimension_semantics<parallel>, #tpu.dimension_semantics<parallel>], iteration_bounds = array<i64: 2, 1>, scalar_prefetch = 0 : i64, scratch_operands = 1 : i64, tpu.core_type = #tpu.core_type<tc>, window_params = [{transform_indices = @transform_0, window_bounds = array<i64: 4, 16, 16>}, {transform_indices = @transform_1, window_bounds = array<i64: 4, 16, 16>}]} {
    %cst = arith.constant 0.000000e+00 : f32
    %0 = vector.broadcast %cst : f32 to vector<4x26x2xf32>
    %c0 = arith.constant 0 : index
    %c0_0 = arith.constant 0 : index
    %c0_1 = arith.constant 0 : index
    %1 = vector.load %arg4[%c0, %c0_0, %c0_1] : memref<4x26x20xf32, #tpu.memory_space<vmem>>, vector<4x26x2xf32>
    tpu.vector_store %arg4[%c0, %c0_0, %c0_1], %0 {strides = array<i32>} : memref<4x26x20xf32, #tpu.memory_space<vmem>>, vector<4x26x2xf32>,
    %cst_2 = arith.constant 0.000000e+00 : f32
    %2 = vector.broadcast %cst_2 : f32 to vector<4x26x2xf32>
    %c0_3 = arith.constant 0 : index
    %c0_4 = arith.constant 0 : index
    %c18 = arith.constant 18 : index
    %3 = vector.load %arg4[%c0_3, %c0_4, %c18] : memref<4x26x20xf32, #tpu.memory_space<vmem>>, vector<4x26x2xf32>
    tpu.vector_store %arg4[%c0_3, %c0_4, %c18], %2 {strides = array<i32>} : memref<4x26x20xf32, #tpu.memory_space<vmem>>, vector<4x26x2xf32>,
    %c0_5 = arith.constant 0 : index
    %c0_6 = arith.constant 0 : index
    %c0_7 = arith.constant 0 : index
    %4 = vector.load %arg2[%c0_5, %c0_6, %c0_7] : memref<4x16x16xf32, #tpu.memory_space<vmem>>, vector<4x16x16xf32>
    %c0_8 = arith.constant 0 : index
    %c8 = arith.constant 8 : index
    %c2 = arith.constant 2 : index
    %5 = vector.load %arg4[%c0_8, %c8, %c2] : memref<4x26x20xf32, #tpu.memory_space<vmem>>, vector<4x16x16xf32>
    tpu.vector_store %arg4[%c0_8, %c8, %c2], %4 {strides = array<i32>} : memref<4x26x20xf32, #tpu.memory_space<vmem>>, vector<4x16x16xf32>,
    %cst_9 = arith.constant 0.000000e+00 : f32
    %6 = vector.broadcast %cst_9 : f32 to vector<4x2x16xf32>
    %cst_10 = arith.constant 0.000000e+00 : f32
    %7 = vector.broadcast %cst_10 : f32 to vector<4x2x16xf32>
    %c0_11 = arith.constant 0 : index
    %c6 = arith.constant 6 : index
    %c2_12 = arith.constant 2 : index
    %8 = vector.load %arg4[%c0_11, %c6, %c2_12] : memref<4x26x20xf32, #tpu.memory_space<vmem>>, vector<4x2x16xf32>
    tpu.vector_store %arg4[%c0_11, %c6, %c2_12], %6 {strides = array<i32>} : memref<4x26x20xf32, #tpu.memory_space<vmem>>, vector<4x2x16xf32>,
    %c0_13 = arith.constant 0 : index
    %c24 = arith.constant 24 : index
    %c2_14 = arith.constant 2 : index
    %9 = vector.load %arg4[%c0_13, %c24, %c2_14] : memref<4x26x20xf32, #tpu.memory_space<vmem>>, vector<4x2x16xf32>
    tpu.vector_store %arg4[%c0_13, %c24, %c2_14], %7 {strides = array<i32>} : memref<4x26x20xf32, #tpu.memory_space<vmem>>, vector<4x2x16xf32>,
    %c0_15 = arith.constant 0 : index
    %c8_16 = arith.constant 8 : index
    %c0_17 = arith.constant 0 : index
    %10 = vector.load %arg4[%c0_15, %c8_16, %c0_17] : memref<4x26x20xf32, #tpu.memory_space<vmem>>, vector<4x16x20xf32>
    %cst_18 = arith.constant 0.402619958 : f32
    %11 = vector.broadcast %cst_18 : f32 to vector<4x16x20xf32>
    %12 = arith.mulf %11, %10 : vector<4x16x20xf32>
    %c0_19 = arith.constant 0 : index
    %c6_20 = arith.constant 6 : index
    %c0_21 = arith.constant 0 : index
    %13 = vector.load %arg4[%c0_19, %c6_20, %c0_21] : memref<4x26x20xf32, #tpu.memory_space<vmem>>, vector<4x16x20xf32>
    %c0_22 = arith.constant 0 : index
    %c10 = arith.constant 10 : index
    %c0_23 = arith.constant 0 : index
    %14 = vector.load %arg4[%c0_22, %c10, %c0_23] : memref<4x26x20xf32, #tpu.memory_space<vmem>>, vector<4x16x20xf32>
    %15 = arith.addf %13, %14 : vector<4x16x20xf32>
    %cst_24 = arith.constant 0.054488685 : f32
    %16 = vector.broadcast %cst_24 : f32 to vector<4x16x20xf32>
    %17 = arith.mulf %16, %15 : vector<4x16x20xf32>
    %18 = arith.addf %12, %17 : vector<4x16x20xf32>
    %c0_25 = arith.constant 0 : index
    %c7 = arith.constant 7 : index
    %c0_26 = arith.constant 0 : index
    %19 = vector.load %arg4[%c0_25, %c7, %c0_26] : memref<4x26x20xf32, #tpu.memory_space<vmem>>, vector<4x16x20xf32>
    %c0_27 = arith.constant 0 : index
    %c9 = arith.constant 9 : index
    %c0_28 = arith.constant 0 : index
    %20 = vector.load %arg4[%c0_27, %c9, %c0_28] : memref<4x26x20xf32, #tpu.memory_space<vmem>>, vector<4x16x20xf32>
    %21 = arith.addf %19, %20 : vector<4x16x20xf32>
    %cst_29 = arith.constant 0.244201347 : f32
    %22 = vector.broadcast %cst_29 : f32 to vector<4x16x20xf32>
    %23 = arith.mulf %22, %21 : vector<4x16x20xf32>
    %24 = arith.addf %18, %23 : vector<4x16x20xf32>
    %25 = vector.extract_strided_slice %24 {offsets = [0, 0, 2], sizes = [4, 16, 16], strides = [1, 1, 1]} : vector<4x16x20xf32> to vector<4x16x16xf32>
    %cst_30 = arith.constant 0.402619958 : f32
    %26 = vector.broadcast %cst_30 : f32 to vector<4x16x16xf32>
    %27 = arith.mulf %26, %25 : vector<4x16x16xf32>
    %28 = vector.extract_strided_slice %24 {offsets = [0, 0, 0], sizes = [4, 16, 16], strides = [1, 1, 1]} : vector<4x16x20xf32> to vector<4x16x16xf32>
    %29 = vector.extract_strided_slice %24 {offsets = [0, 0, 4], sizes = [4, 16, 16], strides = [1, 1, 1]} : vector<4x16x20xf32> to vector<4x16x16xf32>
    %30 = arith.addf %28, %29 : vector<4x16x16xf32>
    %cst_31 = arith.constant 0.054488685 : f32
    %31 = vector.broadcast %cst_31 : f32 to vector<4x16x16xf32>
    %32 = arith.mulf %31, %30 : vector<4x16x16xf32>
    %33 = arith.addf %27, %32 : vector<4x16x16xf32>
    %34 = vector.extract_strided_slice %24 {offsets = [0, 0, 1], sizes = [4, 16, 16], strides = [1, 1, 1]} : vector<4x16x20xf32> to vector<4x16x16xf32>
    %35 = vector.extract_strided_slice %24 {offsets = [0, 0, 3], sizes = [4, 16, 16], strides = [1, 1, 1]} : vector<4x16x20xf32> to vector<4x16x16xf32>
    %36 = arith.addf %34, %35 : vector<4x16x16xf32>
    %cst_32 = arith.constant 0.244201347 : f32
    %37 = vector.broadcast %cst_32 : f32 to vector<4x16x16xf32>
    %38 = arith.mulf %37, %36 : vector<4x16x16xf32>
    %39 = arith.addf %33, %38 : vector<4x16x16xf32>
    %c0_33 = arith.constant 0 : index
    %c0_34 = arith.constant 0 : index
    %c0_35 = arith.constant 0 : index
    %40 = vector.load %arg3[%c0_33, %c0_34, %c0_35] : memref<4x16x16xf32, #tpu.memory_space<vmem>>, vector<4x16x16xf32>
    tpu.vector_store %arg3[%c0_33, %c0_34, %c0_35], %39 {strides = array<i32>} : memref<4x16x16xf32, #tpu.memory_space<vmem>>, vector<4x16x16xf32>,
    return
  }
  func.func @transform_0(%arg0: i32, %arg1: i32) -> (i32, i32, i32) {
    %c0_i32 = arith.constant 0 : i32
    %c0_i32_0 = arith.constant 0 : i32
    return %arg0, %arg1, %c0_i32 : i32, i32, i32
  }
  func.func @transform_1(%arg0: i32, %arg1: i32) -> (i32, i32, i32) {
    %c0_i32 = arith.constant 0 : i32
    %c0_i32_0 = arith.constant 0 : i32
    return %arg0, %arg1, %c0_i32 : i32, i32, i32
  }
}

</mosaic_0001>

<llo_original>
// kernel: tpu_custom_call.1
$region0: #{tpu_custom_call.1}
  #allocation0 [shape = 'u32[]', space=smem, size = 0x4, offset = 0x4, fixed_abs, tag = 'smem constant byte address 0x4 - core index']
  #allocation1 [shape = 'u32[72,128]{1,0:T(1,128)}', space=vmem, size = 0x9000, scoped, tag = 'internal scratch']
  #allocation2 [shape = 'f32[4,26,20]{2,1,0:T(8,128)}', space=vmem, size = 0x10000, scoped, tag = 'scratch operand']
  %s0 = inlined_call_operand.hbm [shape: f32[8,16,16], index: 0, kind: input, shape index: {}]
  %s1 = inlined_call_operand.hbm [shape: f32[8,16,16], index: 1, kind: output, shape index: {}]
  %s2 = sld [smem:[#allocation0]]
  $region41: #{tpu_custom_call.1} parent=0
    _
  %s4 = ssub.s32 1, %s2
  %s5 = scalar_select 0, %s4, %s2
  $region1: #{tpu_custom_call.1} parent=0
    #allocation3 [shape = 'u8[65536]{0}', space=vmem, size = 0x10000, scoped, tag = 'input window, operand 0']
    #allocation4 [shape = 's32[2]{0}', space=sflag, size = 0x8, scoped, tag = 'scoped memory for tpu_custom_call.1']
    #allocation5 [shape = 's32[2]{0}', space=sflag, size = 0x8, scoped, tag = 'scoped memory for tpu_custom_call.1']
    #allocation6 [shape = 'u8[65536]{0}', space=vmem, size = 0x10000, scoped, tag = 'output window, operand 0']
    %6 = vsyncpa [#allocation4], 0
    %s7 = scalar_lea.sflag [#allocation4], 1
    %8 = vsyncpa %s7, 0
    %9 = vsyncpa [#allocation5], 0
    %s10 = scalar_lea.sflag [#allocation5], 1
    %11 = vsyncpa %s10, 0
    loop: start=0, step=1, limit=4
    $region2: #{tpu_custom_call.1} parent=1 // loop_pre_header
      _
    $region3: #{tpu_custom_call.1} parent=1 // loop_header
      %s13 = sphi 0, %s17
      %p14 = scmp.ge.s32.totalorder %s13, 4
      %s20 = sphi 0, %s32
      %s21 = sphi 0, %s28
      %s22 = sphi 0, %s20
      %s23 = sphi 0, %s21
      %s24 = sphi 0, %s22
      %s25 = sphi 0, %s23
      %s37 = sphi 0, %s39
      %s40 = sphi 0, %s37
      %s41 = sphi 0, %s40
      %s57 = sphi 0, %s41
      %s65 = sphi 0, %s67
      %s68 = sphi 0, %s65
      %s69 = sphi 0, %s68
      %s85 = sphi 0, %s69
    $region4: #{tpu_custom_call.1} parent=1 // loop_header_branch
      %16 = sbr.rel (%p14) target = $region8
    $region5: #{tpu_custom_call.1} parent=1 // loop_body
      %s18 = ssub.s32 %s13, 1
      %s19 = ssub.s32 %s13, 2
      %s26 = sadd.s32 1, %s21
      %p27 = scmp.ge.s32.totalorder %s26, 1
      %s28 = scalar_select %p27, 0, %s26
      %s29 = sadd.s32 1, %s20
      %s30 = scalar_select %p27, %s29, %s20
      %p31 = scmp.ge.s32.totalorder %s30, 2
      %s32 = scalar_select %p31, 0, %s30
      %s33 = ssub.s32 %s20, %s32
      %s34 = ssub.s32 %s21, %s28
      %s35 = sor.u32 %s33, %s34
      %p36 = scmp.eq.s32.totalorder %s35, 0
      %s38 = sadd.s32 %s37, 1
      %s39 = scalar_select %p36, %s37, %s38
      %p42 = pneg %p36
      %p43 = scmp.eq.s32.totalorder %s13, 1
      %p44 = por %p42, %p43
      %p45 = scmp.ne.s32.totalorder %s37, %s40
      %p46 = scmp.eq.s32.totalorder %s13, 0
      %p47 = por %p45, %p46
      %p48 = scmp.ne.s32.totalorder %s37, %s40
      %p49 = scmp.eq.s32.totalorder %s18, 1
      %p50 = por %p48, %p49
      %p51 = scmp.ne.s32.totalorder %s40, %s41
      %p52 = scmp.eq.s32.totalorder %s18, 0
      %p53 = por %p51, %p52
      %p54 = scmp.ne.s32.totalorder %s40, %s41
      %p55 = scmp.eq.s32.totalorder %s19, 1
      %p56 = por %p54, %p55
      %p58 = scmp.ne.s32.totalorder %s41, %s57
      %p59 = scmp.eq.s32.totalorder %s19, 0
      %p60 = por %p58, %p59
      %s61 = ssub.s32 %s20, %s32
      %s62 = ssub.s32 %s21, %s28
      %s63 = sor.u32 %s61, %s62
      %p64 = scmp.eq.s32.totalorder %s63, 0
      %s66 = sadd.s32 %s65, 1
      %s67 = scalar_select %p64, %s65, %s66
      %p70 = pneg %p64
      %p71 = scmp.eq.s32.totalorder %s13, 1
      %p72 = por %p70, %p71
      %p73 = scmp.ne.s32.totalorder %s65, %s68
      %p74 = scmp.eq.s32.totalorder %s13, 0
      %p75 = por %p73, %p74
      %p76 = scmp.ne.s32.totalorder %s65, %s68
      %p77 = scmp.eq.s32.totalorder %s18, 1
      %p78 = por %p76, %p77
      %p79 = scmp.ne.s32.totalorder %s68, %s69
      %p80 = scmp.eq.s32.totalorder %s18, 0
      %p81 = por %p79, %p80
      %p82 = scmp.ne.s32.totalorder %s68, %s69
      %p83 = scmp.eq.s32.totalorder %s19, 1
      %p84 = por %p82, %p83
      %p86 = scmp.ne.s32.totalorder %s69, %s85
      %p87 = scmp.eq.s32.totalorder %s19, 0
      %p88 = por %p86, %p87
      %p89 = scmp.le.s32.totalorder 1, %s13
      %p90 = scmp.lt.s32.totalorder %s13, 3
      %p91 = pnand %p89, %p90
      %p92 = pneg %p91
      // Predicated region
      $region9: #{tpu_custom_call.1} parent=5 // pred_check
        _
      $region10: #{tpu_custom_call.1} parent=5 // pred_check_branch
        %94 = sbr.rel (%p91) target = $region12
      $region11: #{tpu_custom_call.1} parent=5 // pred_region
        %s95 = ssub.s32 %s13, 1
      $region12: #{tpu_custom_call.1} parent=5 // pred_fallthru
        _
      %p96 = scmp.lt.s32.totalorder %s13, 2
      // Predicated region
      $region13: #{tpu_custom_call.1} parent=5 // pred_check
        %p97 = pneg %p96
      $region14: #{tpu_custom_call.1} parent=5 // pred_check_branch
        %99 = sbr.rel (%p97) target = $region16
      $region15: #{tpu_custom_call.1} parent=5 // pred_region
        // Predicated region
        $region17: #{tpu_custom_call.1} parent=15 // pred_check
          %p100 = pneg %p47
        $region18: #{tpu_custom_call.1} parent=15 // pred_check_branch
          %102 = sbr.rel (%p100) target = $region20
        $region19: #{tpu_custom_call.1} parent=15 // pred_region
          %s103 = sand.u32 %s37, 1
          %s104 = scalar_lea.sflag [#allocation4], %s103
          %s105 = sand.u32 %s37, 1
          %s106 = smul.addr %s105, 64
          %s107 = scalar_lea.vmem [#allocation3], %s106
          %s108 = smul.u32 4, %s20
          %s109 = smul.u32 2, %s21
          %111 = vsyncadd %s104, 0
          %s112 = smul.addr %s108, 2
          %s113 = sadd.s32 %s109, %s112
          %s114 = smul.addr %s113, 8
          %s115 = scalar_lea.hbm %s0, %s114
          %s116 = sshll.u32 %s115, 4
          %s117 = int_to_ptr.hbm [resolvable:$true] %s116
          %s118 = sshll.u32 %s107, 4
          %s119 = int_to_ptr.vmem [resolvable:$true] %s118
          %124 = dma.hbm_to_vmem [thread:$0]  %s117, 1024, %s119, %s104, 128, 128, 8
        $region20: #{tpu_custom_call.1} parent=15 // pred_fallthru
          _
      $region16: #{tpu_custom_call.1} parent=5 // pred_fallthru
        _
      %p125 = scmp.le.s32.totalorder 1, %s13
      %p126 = scmp.lt.s32.totalorder %s13, 3
      %p127 = pnand %p125, %p126
      %p128 = pneg %p127
      // Predicated region
      $region21: #{tpu_custom_call.1} parent=5 // pred_check
        _
      $region22: #{tpu_custom_call.1} parent=5 // pred_check_branch
        %130 = sbr.rel (%p127) target = $region24
      $region23: #{tpu_custom_call.1} parent=5 // pred_region
        %s131 = ssub.s32 %s13, 1
        %s132 = sand.u32 %s40, 1
        %s133 = scalar_lea.sflag [#allocation4], %s132
        %s134 = sand.u32 %s40, 1
        %s135 = smul.addr %s134, 64
        %s136 = scalar_lea.vmem [#allocation3], %s135
        // Predicated region
        $region25: #{tpu_custom_call.1} parent=23 // pred_check
          %p137 = pneg %p53
        $region26: #{tpu_custom_call.1} parent=23 // pred_check_branch
          %139 = sbr.rel (%p137) target = $region28
        $region27: #{tpu_custom_call.1} parent=23 // pred_region
          %141 = dma.done %s133, 1024
        $region28: #{tpu_custom_call.1} parent=23 // pred_fallthru
          _
        %s142 = sand.u32 %s40, 1
        %s143 = scalar_lea.sflag [#allocation4], %s142
        %s144 = sand.u32 %s40, 1
        %s145 = smul.addr %s144, 64
        %s146 = scalar_lea.vmem [#allocation3], %s145
        %p147 = pneg %p53
        %p148 = pneg %p50
        %p149 = pneg %p81
        %p150 = pneg %p78
        %s151 = sand.u32 %s68, 1
        %s152 = scalar_lea.sflag [#allocation5], %s151
        %s153 = sand.u32 %s68, 1
        %s154 = smul.addr %s153, 64
        %s155 = scalar_lea.vmem [#allocation6], %s154
        %s156 = smul.u32 4, %s22
        %s157 = smul.u32 2, %s23
        %s158 = smul.u32 4, %s22
        %s159 = smul.u32 2, %s23
        %vm160 = vcmask 15360
        %161 = vst.msk [vmem:[#allocation2] sm:$0xff] %vm160, 0.0
        %162 = vst.msk [vmem:[#allocation2 + $0x8] sm:$0xff] %vm160, 0.0
        %163 = vst.msk [vmem:[#allocation2 + $0x10] sm:$0xff] %vm160, 0.0
        %vm164 = vcmask 9216
        %165 = vst.msk [vmem:[#allocation2 + $0x18] sm:$0x3] %vm164, 0.0
        %166 = vst.msk [vmem:[#allocation2 + $0x20] sm:$0xff] %vm160, 0.0
        %167 = vst.msk [vmem:[#allocation2 + $0x28] sm:$0xff] %vm160, 0.0
        %168 = vst.msk [vmem:[#allocation2 + $0x30] sm:$0xff] %vm160, 0.0
        %169 = vst.msk [vmem:[#allocation2 + $0x38] sm:$0x3] %vm164, 0.0
        %170 = vst.msk [vmem:[#allocation2 + $0x40] sm:$0xff] %vm160, 0.0
        %171 = vst.msk [vmem:[#allocation2 + $0x48] sm:$0xff] %vm160, 0.0
        %172 = vst.msk [vmem:[#allocation2 + $0x50] sm:$0xff] %vm160, 0.0
        %173 = vst.msk [vmem:[#allocation2 + $0x58] sm:$0x3] %vm164, 0.0
        %174 = vst.msk [vmem:[#allocation2 + $0x60] sm:$0xff] %vm160, 0.0
        %175 = vst.msk [vmem:[#allocation2 + $0x68] sm:$0xff] %vm160, 0.0
        %176 = vst.msk [vmem:[#allocation2 + $0x70] sm:$0xff] %vm160, 0.0
        %177 = vst.msk [vmem:[#allocation2 + $0x78] sm:$0x3] %vm164, 0.0
        %vm178 = vcmask 162960
        %179 = vst.msk [vmem:[#allocation2] sm:$0xff] %vm178, 0.0
        %180 = vst.msk [vmem:[#allocation2 + $0x8] sm:$0xff] %vm178, 0.0
        %181 = vst.msk [vmem:[#allocation2 + $0x10] sm:$0xff] %vm178, 0.0
        %vm182 = vcmask 156816
        %183 = vst.msk [vmem:[#allocation2 + $0x18] sm:$0x3] %vm182, 0.0
        %184 = vst.msk [vmem:[#allocation2 + $0x20] sm:$0xff] %vm178, 0.0
        %185 = vst.msk [vmem:[#allocation2 + $0x28] sm:$0xff] %vm178, 0.0
        %186 = vst.msk [vmem:[#allocation2 + $0x30] sm:$0xff] %vm178, 0.0
        %187 = vst.msk [vmem:[#allocation2 + $0x38] sm:$0x3] %vm182, 0.0
        %188 = vst.msk [vmem:[#allocation2 + $0x40] sm:$0xff] %vm178, 0.0
        %189 = vst.msk [vmem:[#allocation2 + $0x48] sm:$0xff] %vm178, 0.0
        %190 = vst.msk [vmem:[#allocation2 + $0x50] sm:$0xff] %vm178, 0.0
        %191 = vst.msk [vmem:[#allocation2 + $0x58] sm:$0x3] %vm182, 0.0
        %192 = vst.msk [vmem:[#allocation2 + $0x60] sm:$0xff] %vm178, 0.0
        %193 = vst.msk [vmem:[#allocation2 + $0x68] sm:$0xff] %vm178, 0.0
        %194 = vst.msk [vmem:[#allocation2 + $0x70] sm:$0xff] %vm178, 0.0
        %195 = vst.msk [vmem:[#allocation2 + $0x78] sm:$0x3] %vm182, 0.0
        %v196 = vld [vmem:[%s136] sm:$0xff]
        %v197 = vld [vmem:[%s136 + $0x8] sm:$0xff]
        %v198 = vld [vmem:[%s136 + $0x10] sm:$0xff]
        %v199 = vld [vmem:[%s136 + $0x18] sm:$0xff]
        %v200 = vld [vmem:[%s136 + $0x20] sm:$0xff]
        %v201 = vld [vmem:[%s136 + $0x28] sm:$0xff]
        %v202 = vld [vmem:[%s136 + $0x30] sm:$0xff]
        %v203 = vld [vmem:[%s136 + $0x38] sm:$0xff]
        %212 = vrot.lane.b32.xlu0 %v196, 2
        %v213 = vpop.permute.xlu0 %212
        %214 = vrot.lane.b32.xlu0 %v197, 2
        %v215 = vpop.permute.xlu0 %214
        %216 = vrot.lane.b32.xlu0 %v198, 2
        %v217 = vpop.permute.xlu0 %216
        %218 = vrot.lane.b32.xlu0 %v199, 2
        %v219 = vpop.permute.xlu0 %218
        %220 = vrot.lane.b32.xlu0 %v200, 2
        %v221 = vpop.permute.xlu0 %220
        %222 = vrot.lane.b32.xlu0 %v201, 2
        %v223 = vpop.permute.xlu0 %222
        %224 = vrot.lane.b32.xlu0 %v202, 2
        %v225 = vpop.permute.xlu0 %224
        %226 = vrot.lane.b32.xlu0 %v203, 2
        %v227 = vpop.permute.xlu0 %226
        %vm236 = vcmask 146448
        %237 = vst.msk [vmem:[#allocation2 + $0x8] sm:$0xff] %vm236, %v213
        %238 = vst.msk [vmem:[#allocation2 + $0x10] sm:$0xff] %vm236, %v215
        %239 = vst.msk [vmem:[#allocation2 + $0x28] sm:$0xff] %vm236, %v217
        %240 = vst.msk [vmem:[#allocation2 + $0x30] sm:$0xff] %vm236, %v219
        %241 = vst.msk [vmem:[#allocation2 + $0x48] sm:$0xff] %vm236, %v221
        %242 = vst.msk [vmem:[#allocation2 + $0x50] sm:$0xff] %vm236, %v223
        %243 = vst.msk [vmem:[#allocation2 + $0x68] sm:$0xff] %vm236, %v225
        %244 = vst.msk [vmem:[#allocation2 + $0x70] sm:$0xff] %vm236, %v227
        %vm245 = vcmask 140304
        %246 = vst.msk [vmem:[#allocation2 + $0x6] sm:$0x3] %vm245, 0.0
        %247 = vst.msk [vmem:[#allocation2 + $0x26] sm:$0x3] %vm245, 0.0
        %248 = vst.msk [vmem:[#allocation2 + $0x46] sm:$0x3] %vm245, 0.0
        %249 = vst.msk [vmem:[#allocation2 + $0x66] sm:$0x3] %vm245, 0.0
        %250 = vst.msk [vmem:[#allocation2 + $0x18] sm:$0x3] %vm245, 0.0
        %251 = vst.msk [vmem:[#allocation2 + $0x38] sm:$0x3] %vm245, 0.0
        %252 = vst.msk [vmem:[#allocation2 + $0x58] sm:$0x3] %vm245, 0.0
        %253 = vst.msk [vmem:[#allocation2 + $0x78] sm:$0x3] %vm245, 0.0
        %v254 = vld [vmem:[#allocation2 + $0x8] sm:$0xff]
        %v255 = vld [vmem:[#allocation2 + $0x10] sm:$0xff]
        %v256 = vld [vmem:[#allocation2 + $0x28] sm:$0xff]
        %v257 = vld [vmem:[#allocation2 + $0x30] sm:$0xff]
        %v258 = vld [vmem:[#allocation2 + $0x48] sm:$0xff]
        %v259 = vld [vmem:[#allocation2 + $0x50] sm:$0xff]
        %v260 = vld [vmem:[#allocation2 + $0x68] sm:$0xff]
        %v261 = vld [vmem:[#allocation2 + $0x70] sm:$0xff]
        %v262 = vmul.f32 %v254, 0.40261996
        %v263 = vmul.f32 %v255, 0.40261996
        %v264 = vmul.f32 %v256, 0.40261996
        %v265 = vmul.f32 %v257, 0.40261996
        %v266 = vmul.f32 %v258, 0.40261996
        %v267 = vmul.f32 %v259, 0.40261996
        %v268 = vmul.f32 %v260, 0.40261996
        %v269 = vmul.f32 %v261, 0.40261996
        %v270 = vld [vmem:[#allocation2 + $0x6] sm:$0xff]
        %v271 = vld [vmem:[#allocation2 + $0xe] sm:$0xff]
        %v272 = vld [vmem:[#allocation2 + $0x26] sm:$0xff]
        %v273 = vld [vmem:[#allocation2 + $0x2e] sm:$0xff]
        %v274 = vld [vmem:[#allocation2 + $0x46] sm:$0xff]
        %v275 = vld [vmem:[#allocation2 + $0x4e] sm:$0xff]
        %v276 = vld [vmem:[#allocation2 + $0x66] sm:$0xff]
        %v277 = vld [vmem:[#allocation2 + $0x6e] sm:$0xff]
        %v278 = vld [vmem:[#allocation2 + $0xa] sm:$0xff]
        %v279 = vld [vmem:[#allocation2 + $0x12] sm:$0xff]
        %v280 = vld [vmem:[#allocation2 + $0x2a] sm:$0xff]
        %v281 = vld [vmem:[#allocation2 + $0x32] sm:$0xff]
        %v282 = vld [vmem:[#allocation2 + $0x4a] sm:$0xff]
        %v283 = vld [vmem:[#allocation2 + $0x52] sm:$0xff]
        %v284 = vld [vmem:[#allocation2 + $0x6a] sm:$0xff]
        %v285 = vld [vmem:[#allocation2 + $0x72] sm:$0xff]
        %v286 = vadd.f32 %v270, %v278
        %v287 = vadd.f32 %v271, %v279
        %v288 = vadd.f32 %v272, %v280
        %v289 = vadd.f32 %v273, %v281
        %v290 = vadd.f32 %v274, %v282
        %v291 = vadd.f32 %v275, %v283
        %v292 = vadd.f32 %v276, %v284
        %v293 = vadd.f32 %v277, %v285
        %v294 = vmul.f32 %v286, 0.054488685
        %v295 = vmul.f32 %v287, 0.054488685
        %v296 = vmul.f32 %v288, 0.054488685
        %v297 = vmul.f32 %v289, 0.054488685
        %v298 = vmul.f32 %v290, 0.054488685
        %v299 = vmul.f32 %v291, 0.054488685
        %v300 = vmul.f32 %v292, 0.054488685
        %v301 = vmul.f32 %v293, 0.054488685
        %v302 = vadd.f32 %v262, %v294
        %v303 = vadd.f32 %v263, %v295
        %v304 = vadd.f32 %v264, %v296
        %v305 = vadd.f32 %v265, %v297
        %v306 = vadd.f32 %v266, %v298
        %v307 = vadd.f32 %v267, %v299
        %v308 = vadd.f32 %v268, %v300
        %v309 = vadd.f32 %v269, %v301
        %v310 = vld [vmem:[#allocation2 + $0x7] sm:$0xff]
        %v311 = vld [vmem:[#allocation2 + $0xf] sm:$0xff]
        %v312 = vld [vmem:[#allocation2 + $0x27] sm:$0xff]
        %v313 = vld [vmem:[#allocation2 + $0x2f] sm:$0xff]
        %v314 = vld [vmem:[#allocation2 + $0x47] sm:$0xff]
        %v315 = vld [vmem:[#allocation2 + $0x4f] sm:$0xff]
        %v316 = vld [vmem:[#allocation2 + $0x67] sm:$0xff]
        %v317 = vld [vmem:[#allocation2 + $0x6f] sm:$0xff]
        %v318 = vld [vmem:[#allocation2 + $0x9] sm:$0xff]
        %v319 = vld [vmem:[#allocation2 + $0x11] sm:$0xff]
        %v320 = vld [vmem:[#allocation2 + $0x29] sm:$0xff]
        %v321 = vld [vmem:[#allocation2 + $0x31] sm:$0xff]
        %v322 = vld [vmem:[#allocation2 + $0x49] sm:$0xff]
        %v323 = vld [vmem:[#allocation2 + $0x51] sm:$0xff]
        %v324 = vld [vmem:[#allocation2 + $0x69] sm:$0xff]
        %v325 = vld [vmem:[#allocation2 + $0x71] sm:$0xff]
        %v326 = vadd.f32 %v310, %v318
        %v327 = vadd.f32 %v311, %v319
        %v328 = vadd.f32 %v312, %v320
        %v329 = vadd.f32 %v313, %v321
        %v330 = vadd.f32 %v314, %v322
        %v331 = vadd.f32 %v315, %v323
        %v332 = vadd.f32 %v316, %v324
        %v333 = vadd.f32 %v317, %v325
        %v334 = vmul.f32 %v326, 0.24420135
        %v335 = vmul.f32 %v327, 0.24420135
        %v336 = vmul.f32 %v328, 0.24420135
        %v337 = vmul.f32 %v329, 0.24420135
        %v338 = vmul.f32 %v330, 0.24420135
        %v339 = vmul.f32 %v331, 0.24420135
        %v340 = vmul.f32 %v332, 0.24420135
        %v341 = vmul.f32 %v333, 0.24420135
        %v342 = vadd.f32 %v302, %v334
        %v343 = vadd.f32 %v303, %v335
        %v344 = vadd.f32 %v304, %v336
        %v345 = vadd.f32 %v305, %v337
        %v346 = vadd.f32 %v306, %v338
        %v347 = vadd.f32 %v307, %v339
        %v348 = vadd.f32 %v308, %v340
        %v349 = vadd.f32 %v309, %v341
        %v350 = vmul.f32 %v342, 0.40261996
        %v351 = vmul.f32 %v343, 0.40261996
        %v352 = vmul.f32 %v344, 0.40261996
        %v353 = vmul.f32 %v345, 0.40261996
        %v354 = vmul.f32 %v346, 0.40261996
        %v355 = vmul.f32 %v347, 0.40261996
        %v356 = vmul.f32 %v348, 0.40261996
        %v357 = vmul.f32 %v349, 0.40261996
        %366 = vrot.lane.b32.xlu0 %v342, 124
        %v367 = vpop.permute.xlu0 %366
        %368 = vrot.lane.b32.xlu0 %v343, 124
        %v369 = vpop.permute.xlu0 %368
        %370 = vrot.lane.b32.xlu0 %v344, 124
        %v371 = vpop.permute.xlu0 %370
        %372 = vrot.lane.b32.xlu0 %v345, 124
        %v373 = vpop.permute.xlu0 %372
        %374 = vrot.lane.b32.xlu0 %v346, 124
        %v375 = vpop.permute.xlu0 %374
        %376 = vrot.lane.b32.xlu0 %v347, 124
        %v377 = vpop.permute.xlu0 %376
        %378 = vrot.lane.b32.xlu0 %v348, 124
        %v379 = vpop.permute.xlu0 %378
        %380 = vrot.lane.b32.xlu0 %v349, 124
        %v381 = vpop.permute.xlu0 %380
        %v390 = vadd.f32 %v342, %v367
        %v391 = vadd.f32 %v343, %v369
        %v392 = vadd.f32 %v344, %v371
        %v393 = vadd.f32 %v345, %v373
        %v394 = vadd.f32 %v346, %v375
        %v395 = vadd.f32 %v347, %v377
        %v396 = vadd.f32 %v348, %v379
        %v397 = vadd.f32 %v349, %v381
        %v398 = vmul.f32 %v390, 0.054488685
        %v399 = vmul.f32 %v391, 0.054488685
        %v400 = vmul.f32 %v392, 0.054488685
        %v401 = vmul.f32 %v393, 0.054488685
        %v402 = vmul.f32 %v394, 0.054488685
        %v403 = vmul.f32 %v395, 0.054488685
        %v404 = vmul.f32 %v396, 0.054488685
        %v405 = vmul.f32 %v397, 0.054488685
        %414 = vrot.lane.b32.xlu0 %v398, 2
        %v415 = vpop.permute.xlu0 %414
        %416 = vrot.lane.b32.xlu0 %v399, 2
        %v417 = vpop.permute.xlu0 %416
        %418 = vrot.lane.b32.xlu0 %v400, 2
        %v419 = vpop.permute.xlu0 %418
        %420 = vrot.lane.b32.xlu0 %v401, 2
        %v421 = vpop.permute.xlu0 %420
        %422 = vrot.lane.b32.xlu0 %v402, 2
        %v423 = vpop.permute.xlu0 %422
        %424 = vrot.lane.b32.xlu0 %v403, 2
        %v425 = vpop.permute.xlu0 %424
        %426 = vrot.lane.b32.xlu0 %v404, 2
        %v427 = vpop.permute.xlu0 %426
        %428 = vrot.lane.b32.xlu0 %v405, 2
        %v429 = vpop.permute.xlu0 %428
        %v438 = vadd.f32 %v350, %v415
        %v439 = vadd.f32 %v351, %v417
        %v440 = vadd.f32 %v352, %v419
        %v441 = vadd.f32 %v353, %v421
        %v442 = vadd.f32 %v354, %v423
        %v443 = vadd.f32 %v355, %v425
        %v444 = vadd.f32 %v356, %v427
        %v445 = vadd.f32 %v357, %v429
        %446 = vrot.lane.b32.xlu0 %v342, 126
        %v447 = vpop.permute.xlu0 %446
        %448 = vrot.lane.b32.xlu0 %v343, 126
        %v449 = vpop.permute.xlu0 %448
        %450 = vrot.lane.b32.xlu0 %v344, 126
        %v451 = vpop.permute.xlu0 %450
        %452 = vrot.lane.b32.xlu0 %v345, 126
        %v453 = vpop.permute.xlu0 %452
        %454 = vrot.lane.b32.xlu0 %v346, 126
        %v455 = vpop.permute.xlu0 %454
        %456 = vrot.lane.b32.xlu0 %v347, 126
        %v457 = vpop.permute.xlu0 %456
        %458 = vrot.lane.b32.xlu0 %v348, 126
        %v459 = vpop.permute.xlu0 %458
        %460 = vrot.lane.b32.xlu0 %v349, 126
        %v461 = vpop.permute.xlu0 %460
        %v470 = vadd.f32 %v342, %v447
        %v471 = vadd.f32 %v343, %v449
        %v472 = vadd.f32 %v344, %v451
        %v473 = vadd.f32 %v345, %v453
        %v474 = vadd.f32 %v346, %v455
        %v475 = vadd.f32 %v347, %v457
        %v476 = vadd.f32 %v348, %v459
        %v477 = vadd.f32 %v349, %v461
        %v478 = vmul.f32 %v470, 0.24420135
        %v479 = vmul.f32 %v471, 0.24420135
        %v480 = vmul.f32 %v472, 0.24420135
        %v481 = vmul.f32 %v473, 0.24420135
        %v482 = vmul.f32 %v474, 0.24420135
        %v483 = vmul.f32 %v475, 0.24420135
        %v484 = vmul.f32 %v476, 0.24420135
        %v485 = vmul.f32 %v477, 0.24420135
        %494 = vrot.lane.b32.xlu0 %v478, 1
        %v495 = vpop.permute.xlu0 %494
        %496 = vrot.lane.b32.xlu0 %v479, 1
        %v497 = vpop.permute.xlu0 %496
        %498 = vrot.lane.b32.xlu0 %v480, 1
        %v499 = vpop.permute.xlu0 %498
        %500 = vrot.lane.b32.xlu0 %v481, 1
        %v501 = vpop.permute.xlu0 %500
        %502 = vrot.lane.b32.xlu0 %v482, 1
        %v503 = vpop.permute.xlu0 %502
        %504 = vrot.lane.b32.xlu0 %v483, 1
        %v505 = vpop.permute.xlu0 %504
        %506 = vrot.lane.b32.xlu0 %v484, 1
        %v507 = vpop.permute.xlu0 %506
        %508 = vrot.lane.b32.xlu0 %v485, 1
        %v509 = vpop.permute.xlu0 %508
        %v518 = vadd.f32 %v438, %v495
        %v519 = vadd.f32 %v439, %v497
        %v520 = vadd.f32 %v440, %v499
        %v521 = vadd.f32 %v441, %v501
        %v522 = vadd.f32 %v442, %v503
        %v523 = vadd.f32 %v443, %v505
        %v524 = vadd.f32 %v444, %v507
        %v525 = vadd.f32 %v445, %v509
        %534 = vrot.lane.b32.xlu0 %v518, 126
        %v535 = vpop.permute.xlu0 %534
        %536 = vrot.lane.b32.xlu0 %v519, 126
        %v537 = vpop.permute.xlu0 %536
        %538 = vrot.lane.b32.xlu0 %v520, 126
        %v539 = vpop.permute.xlu0 %538
        %540 = vrot.lane.b32.xlu0 %v521, 126
        %v541 = vpop.permute.xlu0 %540
        %542 = vrot.lane.b32.xlu0 %v522, 126
        %v543 = vpop.permute.xlu0 %542
        %544 = vrot.lane.b32.xlu0 %v523, 126
        %v545 = vpop.permute.xlu0 %544
        %546 = vrot.lane.b32.xlu0 %v524, 126
        %v547 = vpop.permute.xlu0 %546
        %548 = vrot.lane.b32.xlu0 %v525, 126
        %v549 = vpop.permute.xlu0 %548
        %vm558 = vcmask 130048
        %559 = vst.msk [vmem:[%s155] sm:$0xff] %vm558, %v535
        %560 = vst.msk [vmem:[%s155 + $0x8] sm:$0xff] %vm558, %v537
        %561 = vst.msk [vmem:[%s155 + $0x10] sm:$0xff] %vm558, %v539
        %562 = vst.msk [vmem:[%s155 + $0x18] sm:$0xff] %vm558, %v541
        %563 = vst.msk [vmem:[%s155 + $0x20] sm:$0xff] %vm558, %v543
        %564 = vst.msk [vmem:[%s155 + $0x28] sm:$0xff] %vm558, %v545
        %565 = vst.msk [vmem:[%s155 + $0x30] sm:$0xff] %vm558, %v547
        %566 = vst.msk [vmem:[%s155 + $0x38] sm:$0xff] %vm558, %v549
        %s567 = sand.u32 %s68, 1
        %s568 = scalar_lea.sflag [#allocation5], %s567
        %s569 = sand.u32 %s68, 1
        %s570 = smul.addr %s569, 64
        %s571 = scalar_lea.vmem [#allocation6], %s570
        // Predicated region
        $region29: #{tpu_custom_call.1} parent=23 // pred_check
          %p572 = pneg %p78
        $region30: #{tpu_custom_call.1} parent=23 // pred_check_branch
          %574 = sbr.rel (%p572) target = $region32
        $region31: #{tpu_custom_call.1} parent=23 // pred_region
          %s575 = smul.u32 4, %s22
          %s576 = smul.u32 2, %s23
          %578 = vsyncadd %s568, 0
          %s579 = smul.addr %s575, 2
          %s580 = sadd.s32 %s576, %s579
          %s581 = smul.addr %s580, 8
          %s582 = scalar_lea.hbm %s1, %s581
          %s583 = sshll.u32 %s571, 4
          %s584 = int_to_ptr.vmem [resolvable:$true] %s583
          %s585 = sshll.u32 %s582, 4
          %s586 = int_to_ptr.hbm [resolvable:$true] %s585
          %591 = dma.vmem_to_hbm [thread:$0]  %s584, 1024, %s586, %s568, 128, 128, 8
        $region32: #{tpu_custom_call.1} parent=23 // pred_fallthru
          _
      $region24: #{tpu_custom_call.1} parent=5 // pred_fallthru
        _
      %p592 = scmp.le.s32.totalorder 2, %s13
      // Predicated region
      $region33: #{tpu_custom_call.1} parent=5 // pred_check
        %p593 = pneg %p592
      $region34: #{tpu_custom_call.1} parent=5 // pred_check_branch
        %595 = sbr.rel (%p593) target = $region36
      $region35: #{tpu_custom_call.1} parent=5 // pred_region
        %s596 = ssub.s32 %s13, 2
        // Predicated region
        $region37: #{tpu_custom_call.1} parent=35 // pred_check
          %p597 = pneg %p84
        $region38: #{tpu_custom_call.1} parent=35 // pred_check_branch
          %599 = sbr.rel (%p597) target = $region40
        $region39: #{tpu_custom_call.1} parent=35 // pred_region
          %s600 = sand.u32 %s69, 1
          %s601 = scalar_lea.sflag [#allocation5], %s600
          %s602 = sand.u32 %s69, 1
          %s603 = smul.addr %s602, 64
          %s604 = scalar_lea.vmem [#allocation6], %s603
          %606 = dma.done %s601, 1024
        $region40: #{tpu_custom_call.1} parent=35 // pred_fallthru
          _
      $region36: #{tpu_custom_call.1} parent=5 // pred_fallthru
        _
    $region6: #{tpu_custom_call.1} parent=1 // loop_footer
      %s17 = sadd.s32 1, %s13
    $region7: #{tpu_custom_call.1} parent=1 // loop_footer_branch
      %12 = sbr.rel target = $region3
    $region8: #{tpu_custom_call.1} parent=1 // loop_exit
      _
    %607 = vsyncpa [#allocation4], 1
    %s608 = scalar_lea.sflag [#allocation4], 1
    %609 = vsyncpa %s608, 1
    %610 = vsyncpa [#allocation5], 1
    %s611 = scalar_lea.sflag [#allocation5], 1
    %612 = vsyncpa %s611, 1

</llo_original>
